<compile_context>
chip_gen: v6e
topology: v6e:2x2x1
jax: 0.10.0
libtpu: 0.0.40
codegen_flags: <defaults>
</compile_context>

<pallas_src>
import jax
import jax.numpy as jnp
from jax.experimental import pallas as pl
from jax.experimental.pallas import tpu as pltpu


def _round_up(x, m):
    return ((x + m - 1) // m) * m


def gcn_agg_kernel(adj_ref, hw_ref, b_ref, out_ref):
    k = pl.program_id(1)

    @pl.when(k == 0)
    def _():
        # The output block is resident across the whole k axis (same block
        # index every k), so it doubles as the accumulator.  Fold the bias add
        # into its init -- no separate VMEM scratch, no final copy.
        out_ref[...] = jnp.zeros_like(out_ref) + b_ref[...]

    # bf16 x bf16 on the MXU, f32 accumulation into the resident output block.
    out_ref[...] += jnp.dot(adj_ref[...], hw_ref[...],
                            preferred_element_type=jnp.float32)


def gcn_layer(adj, feat, weight, bias, *, tile=512):
    """adj: (N, N) 0/1, feat: (N, Fin), weight: (Fout, Fin), bias: (Fout,)."""
    n, fin = feat.shape
    fout = weight.shape[0]

    # ---- Step 1 (wrapper / XLA): HW = H @ W^T, computed once in f32. ----
    hw = jnp.dot(feat.astype(jnp.float32), weight.astype(jnp.float32).T)

    # ---- Tiling (t forced to a multiple of 128). ----
    fout_p = _round_up(fout, 128)                     # lane-dense output width
    n128 = _round_up(n, 128)
    t = _round_up(max(min(int(tile), n128), 128), 128)
    t = min(t, n128)
    # v7x megacore: the "parallel" row axis is what shards work across the two
    # TensorCores; prefer >= 2 row tiles whenever the graph can be split.
    if t >= n128 and n128 >= 256:
        t = _round_up(n128 // 2, 128)
    n_p = _round_up(n, t)

    # ---- Zero-padded operands; adjacency and HW streamed as bf16. ----
    adj_p = jnp.zeros((n_p, n_p), jnp.bfloat16).at[:n, :n].set(
        adj.astype(jnp.bfloat16))
    hw_p = jnp.zeros((n_p, fout_p), jnp.bfloat16).at[:n, :fout].set(
        hw.astype(jnp.bfloat16))
    b2d = jnp.zeros((1, fout_p), jnp.float32).at[:, :fout].set(
        bias.astype(jnp.float32))

    grid = (n_p // t, n_p // t)

    # Per-step VMEM: double-buffered bf16 A tile + bf16 HW tile, (double-
    # buffered) f32 output block, resident bias.  Cap at 48 MiB -> safe on
    # v7x (64 MiB physical) while still allowing big tiles on v5e/v6e.
    vmem_need = (2 * t * t * 2 + 2 * t * fout_p * 2
                 + 2 * t * fout_p * 4 + fout_p * 4)
    vmem_limit = int(min(max(2 * vmem_need, 16 * 1024 * 1024),
                         48 * 1024 * 1024))

    # Advisory cost estimate (the dominant A @ HW reduction).
    flops = 2 * n_p * n_p * fout_p
    bytes_accessed = (int(adj_p.size) * 2              # bf16 adjacency, once
                      + grid[0] * int(hw_p.size) * 2   # bf16 HW, per row tile
                      + int(b2d.size) * 4
                      + n_p * fout_p * 4)              # f32 output write

    out_p = pl.pallas_call(
        gcn_agg_kernel,
        out_shape=jax.ShapeDtypeStruct((n_p, fout_p), jnp.float32),
        grid_spec=pltpu.PrefetchScalarGridSpec(
            num_scalar_prefetch=0,
            grid=grid,
            in_specs=[
                pl.BlockSpec((t, t), lambda i, k: (i, k)),         # A tile
                pl.BlockSpec((t, fout_p), lambda i, k: (k, 0)),    # HW tile
                pl.BlockSpec((1, fout_p), lambda i, k: (0, 0)),    # bias
            ],
            out_specs=pl.BlockSpec((t, fout_p), lambda i, k: (i, 0)),
        ),
        compiler_params=pltpu.CompilerParams(
            dimension_semantics=("parallel", "arbitrary"),
            vmem_limit_bytes=vmem_limit,
        ),
        cost_estimate=pl.CostEstimate(flops=flops, transcendentals=0,
                                      bytes_accessed=bytes_accessed),
    )(adj_p, hw_p, b2d)

    return out_p[:n, :fout]


if __name__ == "__main__":
    key = jax.random.PRNGKey(0)
    k_adj, k_feat, k_w, k_b = jax.random.split(key, 4)

    # Small shapes, large enough (with the default tile heuristics) to
    # exercise a real 2x2 grid: parallel row tiles + k-axis accumulation.
    N, IN_FEATS, OUT_FEATS = 192, 32, 16

    # Synthetic random graph (dense 0/1 adjacency, ~20% edge density).
    adj = (jax.random.uniform(k_adj, (N, N)) < 0.2).astype(jnp.float32)
    feat = jax.random.normal(k_feat, (N, IN_FEATS), dtype=jnp.float32)

    # Deterministic nn.Linear-style init: U(-1/sqrt(in), 1/sqrt(in)).
    bound = 1.0 / (IN_FEATS ** 0.5)
    weight = jax.random.uniform(k_w, (OUT_FEATS, IN_FEATS),
                                minval=-bound, maxval=bound,
                                dtype=jnp.float32)
    bias = jax.random.uniform(k_b, (OUT_FEATS,),
                              minval=-bound, maxval=bound,
                              dtype=jnp.float32)

    # Pure-JAX f32 reference (original association: (A @ H) @ W^T + b).
    ref = (adj @ feat) @ weight.T + bias

    # Default tile path (heuristic splits rows into 2 tiles -> 2x2 grid).
    out = gcn_layer(adj, feat, weight, bias)
    jax.block_until_ready(out)
    assert out.shape == (N, OUT_FEATS)
    err = float(jnp.max(jnp.abs(out - ref)))
    assert jnp.allclose(out, ref, atol=5e-2, rtol=2e-2), err

    # Smaller-graph path (single block on each axis).
    N2 = 100
    adj2 = adj[:N2, :N2]
    feat2 = feat[:N2]
    ref2 = (adj2 @ feat2) @ weight.T + bias
    out2 = gcn_layer(adj2, feat2, weight, bias)
    jax.block_until_ready(out2)
    err2 = float(jnp.max(jnp.abs(out2 - ref2)))
    assert out2.shape == (N2, OUT_FEATS)
    assert jnp.allclose(out2, ref2, atol=5e-2, rtol=2e-2), err2

    print("KERNEL_OK")
</pallas_src>

<mosaic_0001>
module attributes {stable_mosaic.version = 11 : i64} {
  func.func @gcn_agg_kernel(%arg0: i32, %arg1: i32, %arg2: memref<128x128xbf16, #tpu.memory_space<vmem>>, %arg3: memref<128x128xbf16, #tpu.memory_space<vmem>>, %arg4: memref<1x128xf32, #tpu.memory_space<vmem>>, %arg5: memref<128x128xf32, #tpu.memory_space<vmem>>) attributes {dimension_semantics = [#tpu.dimension_semantics<parallel>, #tpu.dimension_semantics<arbitrary>], iteration_bounds = array<i64: 2, 2>, scalar_prefetch = 0 : i64, scratch_operands = 0 : i64, tpu.core_type = #tpu.core_type<tc>, window_params = [{transform_indices = @transform_0, window_bounds = array<i64: 128, 128>}, {transform_indices = @transform_1, window_bounds = array<i64: 128, 128>}, {pipeline_mode = #tpu.pipeline_mode<synchronous>, transform_indices = @transform_2, window_bounds = array<i64: 1, 128>}, {transform_indices = @transform_3, window_bounds = array<i64: 128, 128>}]} {
    %c0_i32 = arith.constant 0 : i32
    %0 = arith.cmpi eq, %arg1, %c0_i32 : i32
    %1 = arith.extui %0 : i1 to i32
    %c0_i32_0 = arith.constant 0 : i32
    %2 = arith.cmpi ne, %1, %c0_i32_0 : i32
    scf.if %2 {
      %cst_8 = arith.constant 0.000000e+00 : f32
      %9 = vector.broadcast %cst_8 : f32 to vector<128x128xf32>
      %c0_9 = arith.constant 0 : index
      %c0_10 = arith.constant 0 : index
      %10 = vector.load %arg4[%c0_9, %c0_10] : memref<1x128xf32, #tpu.memory_space<vmem>>, vector<1x128xf32>
      %11 = vector.broadcast %10 : vector<1x128xf32> to vector<128x128xf32>
      %12 = arith.addf %9, %11 : vector<128x128xf32>
      %c0_11 = arith.constant 0 : index
      %c0_12 = arith.constant 0 : index
      %13 = vector.load %arg5[%c0_11, %c0_12] : memref<128x128xf32, #tpu.memory_space<vmem>>, vector<128x128xf32>
      tpu.vector_store %arg5[%c0_11, %c0_12], %12 {strides = array<i32>} : memref<128x128xf32, #tpu.memory_space<vmem>>, vector<128x128xf32>,
    } else {
    }
    %c0 = arith.constant 0 : index
    %c0_1 = arith.constant 0 : index
    %3 = vector.load %arg5[%c0, %c0_1] : memref<128x128xf32, #tpu.memory_space<vmem>>, vector<128x128xf32>
    %c0_2 = arith.constant 0 : index
    %c0_3 = arith.constant 0 : index
    %4 = vector.load %arg2[%c0_2, %c0_3] : memref<128x128xbf16, #tpu.memory_space<vmem>>, vector<128x128xbf16>
    %c0_4 = arith.constant 0 : index
    %c0_5 = arith.constant 0 : index
    %5 = vector.load %arg3[%c0_4, %c0_5] : memref<128x128xbf16, #tpu.memory_space<vmem>>, vector<128x128xbf16>
    %cst = arith.constant dense<0.000000e+00> : vector<128x128xf32>
    %6 = tpu.matmul %4, %5, %cst {dimension_numbers = #tpu.dot_dimension_numbers<[1], [0], [0], [1], [0, 0, 1, 1], [], []>} : vector<128x128xbf16>, vector<128x128xbf16>, vector<128x128xf32> -> vector<128x128xf32>
    %7 = arith.addf %3, %6 : vector<128x128xf32>
    %c0_6 = arith.constant 0 : index
    %c0_7 = arith.constant 0 : index
    %8 = vector.load %arg5[%c0_6, %c0_7] : memref<128x128xf32, #tpu.memory_space<vmem>>, vector<128x128xf32>
    tpu.vector_store %arg5[%c0_6, %c0_7], %7 {strides = array<i32>} : memref<128x128xf32, #tpu.memory_space<vmem>>, vector<128x128xf32>,
    return
  }
  func.func @transform_0(%arg0: i32, %arg1: i32) -> (i32, i32) {
    %c0_i32 = arith.constant 0 : i32
    return %arg0, %arg1 : i32, i32
  }
  func.func @transform_1(%arg0: i32, %arg1: i32) -> (i32, i32) {
    %c0_i32 = arith.constant 0 : i32
    %c0_i32_0 = arith.constant 0 : i32
    return %arg1, %c0_i32 : i32, i32
  }
  func.func @transform_2(%arg0: i32, %arg1: i32) -> (i32, i32) {
    %c0_i32 = arith.constant 0 : i32
    %c0_i32_0 = arith.constant 0 : i32
    %c0_i32_1 = arith.constant 0 : i32
    return %c0_i32, %c0_i32_0 : i32, i32
  }
  func.func @transform_3(%arg0: i32, %arg1: i32) -> (i32, i32) {
    %c0_i32 = arith.constant 0 : i32
    %c0_i32_0 = arith.constant 0 : i32
    return %arg0, %c0_i32 : i32, i32
  }
}

</mosaic_0001>

<llo_original>
// kernel: tpu_custom_call.1
$region0: #{tpu_custom_call.1}
  #allocation0 [shape = 'u32[]', space=smem, size = 0x4, offset = 0x4, fixed_abs, tag = 'smem constant byte address 0x4 - core index']
  #allocation1 [shape = 'u32[144,128]{1,0:T(1,128)}', space=vmem, size = 0x12000, scoped, tag = 'internal scratch']
  %s0 = inlined_call_operand.hbm [shape: bf16[256,256], index: 0, kind: input, shape index: {}]
  %s1 = inlined_call_operand.hbm [shape: bf16[256,128], index: 1, kind: input, shape index: {}]
  %s2 = inlined_call_operand.vmem [shape: f32[1,128], index: 2, kind: input, shape index: {}]
  %s3 = inlined_call_operand.hbm [shape: f32[256,128], index: 3, kind: output, shape index: {}]
  %s4 = sld [smem:[#allocation0]]
  $region57: #{tpu_custom_call.1} parent=0
    _
  %s6 = ssub.s32 1, %s4
  %s7 = scalar_select 0, %s6, %s4
  $region1: #{tpu_custom_call.1} parent=0
    #allocation2 [shape = 'u8[65536]{0}', space=vmem, size = 0x10000, scoped, tag = 'input window, operand 0']
    #allocation3 [shape = 's32[2]{0}', space=sflag, size = 0x8, scoped, tag = 'scoped memory for tpu_custom_call.1']
    #allocation4 [shape = 's32[2]{0}', space=sflag, size = 0x8, scoped, tag = 'scoped memory for tpu_custom_call.1']
    #allocation5 [shape = 'u8[65536]{0}', space=vmem, size = 0x10000, scoped, tag = 'input window, operand 1']
    #allocation6 [shape = 's32[2]{0}', space=sflag, size = 0x8, scoped, tag = 'scoped memory for tpu_custom_call.1']
    #allocation7 [shape = 'u8[131072]{0}', space=vmem, size = 0x20000, scoped, tag = 'output window, operand 0']
    %8 = vsyncpa [#allocation3], 0
    %s9 = scalar_lea.sflag [#allocation3], 1
    %10 = vsyncpa %s9, 0
    %11 = vsyncpa [#allocation6], 0
    %s12 = scalar_lea.sflag [#allocation6], 1
    %13 = vsyncpa %s12, 0
    %14 = vsyncpa [#allocation4], 0
    %s15 = scalar_lea.sflag [#allocation4], 1
    %16 = vsyncpa %s15, 0
    loop: start=0, step=1, limit=6
    $region2: #{tpu_custom_call.1} parent=1 // loop_pre_header
      _
    $region3: #{tpu_custom_call.1} parent=1 // loop_header
      %s18 = sphi 0, %s22
      %p19 = scmp.ge.s32.totalorder %s18, 6
      %s25 = sphi 0, %s37
      %s26 = sphi 0, %s33
      %s27 = sphi 0, %s25
      %s28 = sphi 0, %s26
      %s29 = sphi 0, %s27
      %s30 = sphi 0, %s28
      %s42 = sphi 0, %s44
      %s45 = sphi 0, %s42
      %s46 = sphi 0, %s45
      %s62 = sphi 0, %s46
      %s68 = sphi 0, %s70
      %s71 = sphi 0, %s68
      %s72 = sphi 0, %s71
      %s88 = sphi 0, %s72
      %s92 = sphi 0, %s92
      %s94 = sphi 0, %s92
      %s95 = sphi 0, %s94
      %s109 = sphi 0, %s95
      %s115 = sphi 0, %s117
      %s118 = sphi 0, %s115
      %s119 = sphi 0, %s118
      %s135 = sphi 0, %s119
    $region4: #{tpu_custom_call.1} parent=1 // loop_header_branch
      %21 = sbr.rel (%p19) target = $region8
    $region5: #{tpu_custom_call.1} parent=1 // loop_body
      %s23 = ssub.s32 %s18, 1
      %s24 = ssub.s32 %s18, 2
      %s31 = sadd.s32 1, %s26
      %p32 = scmp.ge.s32.totalorder %s31, 2
      %s33 = scalar_select %p32, 0, %s31
      %s34 = sadd.s32 1, %s25
      %s35 = scalar_select %p32, %s34, %s25
      %p36 = scmp.ge.s32.totalorder %s35, 2
      %s37 = scalar_select %p36, 0, %s35
      %s38 = ssub.s32 %s25, %s37
      %s39 = ssub.s32 %s26, %s33
      %s40 = sor.u32 %s38, %s39
      %p41 = scmp.eq.s32.totalorder %s40, 0
      %s43 = sadd.s32 %s42, 1
      %s44 = scalar_select %p41, %s42, %s43
      %p47 = pneg %p41
      %p48 = scmp.eq.s32.totalorder %s18, 3
      %p49 = por %p47, %p48
      %p50 = scmp.ne.s32.totalorder %s42, %s45
      %p51 = scmp.eq.s32.totalorder %s18, 0
      %p52 = por %p50, %p51
      %p53 = scmp.ne.s32.totalorder %s42, %s45
      %p54 = scmp.eq.s32.totalorder %s23, 3
      %p55 = por %p53, %p54
      %p56 = scmp.ne.s32.totalorder %s45, %s46
      %p57 = scmp.eq.s32.totalorder %s23, 0
      %p58 = por %p56, %p57
      %p59 = scmp.ne.s32.totalorder %s45, %s46
      %p60 = scmp.eq.s32.totalorder %s24, 3
      %p61 = por %p59, %p60
      %p63 = scmp.ne.s32.totalorder %s46, %s62
      %p64 = scmp.eq.s32.totalorder %s24, 0
      %p65 = por %p63, %p64
      %s66 = ssub.s32 %s26, %s33
      %p67 = scmp.eq.s32.totalorder %s66, 0
      %s69 = sadd.s32 %s68, 1
      %s70 = scalar_select %p67, %s68, %s69
      %p73 = pneg %p67
      %p74 = scmp.eq.s32.totalorder %s18, 3
      %p75 = por %p73, %p74
      %p76 = scmp.ne.s32.totalorder %s68, %s71
      %p77 = scmp.eq.s32.totalorder %s18, 0
      %p78 = por %p76, %p77
      %p79 = scmp.ne.s32.totalorder %s68, %s71
      %p80 = scmp.eq.s32.totalorder %s23, 3
      %p81 = por %p79, %p80
      %p82 = scmp.ne.s32.totalorder %s71, %s72
      %p83 = scmp.eq.s32.totalorder %s23, 0
      %p84 = por %p82, %p83
      %p85 = scmp.ne.s32.totalorder %s71, %s72
      %p86 = scmp.eq.s32.totalorder %s24, 3
      %p87 = por %p85, %p86
      %p89 = scmp.ne.s32.totalorder %s72, %s88
      %p90 = scmp.eq.s32.totalorder %s24, 0
      %p91 = por %p89, %p90
      %s93 = sadd.s32 %s92, 1
      %p96 = scmp.eq.s32.totalorder %s18, 3
      %p97 = scmp.ne.s32.totalorder %s92, %s94
      %p98 = scmp.eq.s32.totalorder %s18, 0
      %p99 = por %p97, %p98
      %p100 = scmp.ne.s32.totalorder %s92, %s94
      %p101 = scmp.eq.s32.totalorder %s23, 3
      %p102 = por %p100, %p101
      %p103 = scmp.ne.s32.totalorder %s94, %s95
      %p104 = scmp.eq.s32.totalorder %s23, 0
      %p105 = por %p103, %p104
      %p106 = scmp.ne.s32.totalorder %s94, %s95
      %p107 = scmp.eq.s32.totalorder %s24, 3
      %p108 = por %p106, %p107
      %p110 = scmp.ne.s32.totalorder %s95, %s109
      %p111 = scmp.eq.s32.totalorder %s24, 0
      %p112 = por %p110, %p111
      %s113 = ssub.s32 %s25, %s37
      %p114 = scmp.eq.s32.totalorder %s113, 0
      %s116 = sadd.s32 %s115, 1
      %s117 = scalar_select %p114, %s115, %s116
      %p120 = pneg %p114
      %p121 = scmp.eq.s32.totalorder %s18, 3
      %p122 = por %p120, %p121
      %p123 = scmp.ne.s32.totalorder %s115, %s118
      %p124 = scmp.eq.s32.totalorder %s18, 0
      %p125 = por %p123, %p124
      %p126 = scmp.ne.s32.totalorder %s115, %s118
      %p127 = scmp.eq.s32.totalorder %s23, 3
      %p128 = por %p126, %p127
      %p129 = scmp.ne.s32.totalorder %s118, %s119
      %p130 = scmp.eq.s32.totalorder %s23, 0
      %p131 = por %p129, %p130
      %p132 = scmp.ne.s32.totalorder %s118, %s119
      %p133 = scmp.eq.s32.totalorder %s24, 3
      %p134 = por %p132, %p133
      %p136 = scmp.ne.s32.totalorder %s119, %s135
      %p137 = scmp.eq.s32.totalorder %s24, 0
      %p138 = por %p136, %p137
      %p139 = scmp.le.s32.totalorder 1, %s18
      %p140 = scmp.lt.s32.totalorder %s18, 5
      %p141 = pnand %p139, %p140
      %p142 = pneg %p141
      // Predicated region
      $region9: #{tpu_custom_call.1} parent=5 // pred_check
        _
      $region10: #{tpu_custom_call.1} parent=5 // pred_check_branch
        %144 = sbr.rel (%p141) target = $region12
      $region11: #{tpu_custom_call.1} parent=5 // pred_region
        %s145 = ssub.s32 %s18, 1
        // Predicated region
        $region13: #{tpu_custom_call.1} parent=11 // pred_check
          %p146 = pneg %p105
        $region14: #{tpu_custom_call.1} parent=11 // pred_check_branch
          %148 = sbr.rel (%p146) target = $region16
        $region15: #{tpu_custom_call.1} parent=11 // pred_region
          _
        $region16: #{tpu_custom_call.1} parent=11 // pred_fallthru
          _
      $region12: #{tpu_custom_call.1} parent=5 // pred_fallthru
        _
      %p149 = scmp.lt.s32.totalorder %s18, 4
      // Predicated region
      $region17: #{tpu_custom_call.1} parent=5 // pred_check
        %p150 = pneg %p149
      $region18: #{tpu_custom_call.1} parent=5 // pred_check_branch
        %152 = sbr.rel (%p150) target = $region20
      $region19: #{tpu_custom_call.1} parent=5 // pred_region
        // Predicated region
        $region21: #{tpu_custom_call.1} parent=19 // pred_check
          %p153 = pneg %p52
        $region22: #{tpu_custom_call.1} parent=19 // pred_check_branch
          %155 = sbr.rel (%p153) target = $region24
        $region23: #{tpu_custom_call.1} parent=19 // pred_region
          %s156 = sand.u32 %s42, 1
          %s157 = scalar_lea.sflag [#allocation3], %s156
          %s158 = sand.u32 %s42, 1
          %s159 = smul.addr %s158, 64
          %s160 = scalar_lea.vmem [#allocation2], %s159
          %s161 = smul.u32 16, %s25
          %s163 = ssub.s32 1024, 1024
          %164 = vsyncadd %s157, %s163
          %s165 = smul.addr %s161, 2
          %s166 = sadd.s32 %s26, %s165
          %s167 = smul.addr %s166, 64
          %s168 = scalar_lea.hbm %s0, %s167
          %s169 = sshll.u32 %s160, 4
          %s170 = int_to_ptr.vmem [resolvable:$true] %s169
          %175 = dma.hbm_to_vmem [thread:$0]  %s168, 1024, %s170, %s157, 128, 64, 4
        $region24: #{tpu_custom_call.1} parent=19 // pred_fallthru
          _
        // Predicated region
        $region25: #{tpu_custom_call.1} parent=19 // pred_check
          %p176 = pneg %p78
        $region26: #{tpu_custom_call.1} parent=19 // pred_check_branch
          %178 = sbr.rel (%p176) target = $region28
        $region27: #{tpu_custom_call.1} parent=19 // pred_region
          %s179 = sand.u32 %s68, 1
          %s180 = scalar_lea.sflag [#allocation6], %s179
          %s181 = sand.u32 %s68, 1
          %s182 = smul.addr %s181, 64
          %s183 = scalar_lea.vmem [#allocation5], %s182
          %s184 = smul.u32 16, %s26
          %s186 = ssub.s32 1024, 1024
          %187 = vsyncadd %s180, %s186
          %s188 = smul.addr %s184, 64
          %s189 = scalar_lea.hbm %s1, %s188
          %s190 = sshll.u32 %s183, 4
          %s191 = int_to_ptr.vmem [resolvable:$true] %s190
          %196 = dma.hbm_to_vmem [thread:$0]  %s189, 1024, %s191, %s180, 64, 64, 4
        $region28: #{tpu_custom_call.1} parent=19 // pred_fallthru
          _
      $region20: #{tpu_custom_call.1} parent=5 // pred_fallthru
        _
      %p197 = scmp.le.s32.totalorder 1, %s18
      %p198 = scmp.lt.s32.totalorder %s18, 5
      %p199 = pnand %p197, %p198
      %p200 = pneg %p199
      // Predicated region
      $region29: #{tpu_custom_call.1} parent=5 // pred_check
        _
      $region30: #{tpu_custom_call.1} parent=5 // pred_check_branch
        %202 = sbr.rel (%p199) target = $region32
      $region31: #{tpu_custom_call.1} parent=5 // pred_region
        %s203 = ssub.s32 %s18, 1
        %s204 = sand.u32 %s45, 1
        %s205 = scalar_lea.sflag [#allocation3], %s204
        %s206 = sand.u32 %s45, 1
        %s207 = smul.addr %s206, 64
        %s208 = scalar_lea.vmem [#allocation2], %s207
        // Predicated region
        $region33: #{tpu_custom_call.1} parent=31 // pred_check
          %p209 = pneg %p58
        $region34: #{tpu_custom_call.1} parent=31 // pred_check_branch
          %211 = sbr.rel (%p209) target = $region36
        $region35: #{tpu_custom_call.1} parent=31 // pred_region
          %212 = dma.done %s205, 1024
        $region36: #{tpu_custom_call.1} parent=31 // pred_fallthru
          _
        %s213 = sand.u32 %s71, 1
        %s214 = scalar_lea.sflag [#allocation6], %s213
        %s215 = sand.u32 %s71, 1
        %s216 = smul.addr %s215, 64
        %s217 = scalar_lea.vmem [#allocation5], %s216
        // Predicated region
        $region37: #{tpu_custom_call.1} parent=31 // pred_check
          %p218 = pneg %p84
        $region38: #{tpu_custom_call.1} parent=31 // pred_check_branch
          %220 = sbr.rel (%p218) target = $region40
        $region39: #{tpu_custom_call.1} parent=31 // pred_region
          %221 = dma.done %s214, 1024
        $region40: #{tpu_custom_call.1} parent=31 // pred_fallthru
          _
        %s222 = sand.u32 %s45, 1
        %s223 = scalar_lea.sflag [#allocation3], %s222
        %s224 = sand.u32 %s45, 1
        %s225 = smul.addr %s224, 64
        %s226 = scalar_lea.vmem [#allocation2], %s225
        %p227 = pneg %p58
        %p228 = pneg %p55
        %s229 = sand.u32 %s71, 1
        %s230 = scalar_lea.sflag [#allocation6], %s229
        %s231 = sand.u32 %s71, 1
        %s232 = smul.addr %s231, 64
        %s233 = scalar_lea.vmem [#allocation5], %s232
        %p234 = pneg %p84
        %p235 = pneg %p81
        %p236 = pneg %p105
        %p237 = pneg %p102
        %p238 = pneg %p131
        %p239 = pneg %p128
        %s240 = sand.u32 %s118, 1
        %s241 = scalar_lea.sflag [#allocation4], %s240
        %s242 = sand.u32 %s118, 1
        %s243 = smul.addr %s242, 128
        %s244 = scalar_lea.vmem [#allocation7], %s243
        %s245 = smul.u32 16, %s27
        %s246 = smul.u32 16, %s28
        %s247 = smul.u32 16, %s27
        %p249 = scmp.eq.s32.totalorder %s28, 0
        // Predicated region
        $region41: #{tpu_custom_call.1} parent=31 // pred_check
          %p250 = pneg %p249
        $region42: #{tpu_custom_call.1} parent=31 // pred_check_branch
          %252 = sbr.rel (%p250) target = $region44
        $region43: #{tpu_custom_call.1} parent=31 // pred_region
          %v253 = vld [vmem:[%s2] sm:$0x1]
          %v255 = vlaneseq
          %v256 = vshrl.u32 %v255, 7
          %v257 = vsub.s32 0, %v256
          %v258 = vrot.slane %v253, %v257
          %v260 = vadd.f32 %v258, 0.0
          %261 = vst [vmem:[%s244] sm:$0xff] %v260
          %262 = vst [vmem:[%s244 + $0x8] sm:$0xff] %v260
          %263 = vst [vmem:[%s244 + $0x10] sm:$0xff] %v260
          %264 = vst [vmem:[%s244 + $0x18] sm:$0xff] %v260
          %265 = vst [vmem:[%s244 + $0x20] sm:$0xff] %v260
          %266 = vst [vmem:[%s244 + $0x28] sm:$0xff] %v260
          %267 = vst [vmem:[%s244 + $0x30] sm:$0xff] %v260
          %268 = vst [vmem:[%s244 + $0x38] sm:$0xff] %v260
          %269 = vst [vmem:[%s244 + $0x40] sm:$0xff] %v260
          %270 = vst [vmem:[%s244 + $0x48] sm:$0xff] %v260
          %271 = vst [vmem:[%s244 + $0x50] sm:$0xff] %v260
          %272 = vst [vmem:[%s244 + $0x58] sm:$0xff] %v260
          %273 = vst [vmem:[%s244 + $0x60] sm:$0xff] %v260
          %274 = vst [vmem:[%s244 + $0x68] sm:$0xff] %v260
          %275 = vst [vmem:[%s244 + $0x70] sm:$0xff] %v260
          %276 = vst [vmem:[%s244 + $0x78] sm:$0xff] %v260
        $region44: #{tpu_custom_call.1} parent=31 // pred_fallthru
          _
        %v277 = vld [vmem:[%s244] sm:$0xff]
        %v278 = vld [vmem:[%s244 + $0x8] sm:$0xff]
        %v279 = vld [vmem:[%s244 + $0x10] sm:$0xff]
        %v280 = vld [vmem:[%s244 + $0x18] sm:$0xff]
        %v281 = vld [vmem:[%s244 + $0x20] sm:$0xff]
        %v282 = vld [vmem:[%s244 + $0x28] sm:$0xff]
        %v283 = vld [vmem:[%s244 + $0x30] sm:$0xff]
        %v284 = vld [vmem:[%s244 + $0x38] sm:$0xff]
        %v285 = vld [vmem:[%s244 + $0x40] sm:$0xff]
        %v286 = vld [vmem:[%s244 + $0x48] sm:$0xff]
        %v287 = vld [vmem:[%s244 + $0x50] sm:$0xff]
        %v288 = vld [vmem:[%s244 + $0x58] sm:$0xff]
        %v289 = vld [vmem:[%s244 + $0x60] sm:$0xff]
        %v290 = vld [vmem:[%s244 + $0x68] sm:$0xff]
        %v291 = vld [vmem:[%s244 + $0x70] sm:$0xff]
        %v292 = vld [vmem:[%s244 + $0x78] sm:$0xff]
        %v293 = vld [vmem:[%s208] sm:$0xf]
        %v294 = vld [vmem:[%s208 + $0x4] sm:$0xf]
        %v295 = vld [vmem:[%s208 + $0x8] sm:$0xf]
        %v296 = vld [vmem:[%s208 + $0xc] sm:$0xf]
        %v297 = vld [vmem:[%s208 + $0x10] sm:$0xf]
        %v298 = vld [vmem:[%s208 + $0x14] sm:$0xf]
        %v299 = vld [vmem:[%s208 + $0x18] sm:$0xf]
        %v300 = vld [vmem:[%s208 + $0x1c] sm:$0xf]
        %v301 = vld [vmem:[%s208 + $0x20] sm:$0xf]
        %v302 = vld [vmem:[%s208 + $0x24] sm:$0xf]
        %v303 = vld [vmem:[%s208 + $0x28] sm:$0xf]
        %v304 = vld [vmem:[%s208 + $0x2c] sm:$0xf]
        %v305 = vld [vmem:[%s208 + $0x30] sm:$0xf]
        %v306 = vld [vmem:[%s208 + $0x34] sm:$0xf]
        %v307 = vld [vmem:[%s208 + $0x38] sm:$0xf]
        %v308 = vld [vmem:[%s208 + $0x3c] sm:$0xf]
        %v309 = vld [vmem:[%s217] sm:$0xf]
        %v310 = vld [vmem:[%s217 + $0x4] sm:$0xf]
        %v311 = vld [vmem:[%s217 + $0x8] sm:$0xf]
        %v312 = vld [vmem:[%s217 + $0xc] sm:$0xf]
        %v313 = vld [vmem:[%s217 + $0x10] sm:$0xf]
        %v314 = vld [vmem:[%s217 + $0x14] sm:$0xf]
        %v315 = vld [vmem:[%s217 + $0x18] sm:$0xf]
        %v316 = vld [vmem:[%s217 + $0x1c] sm:$0xf]
        %v317 = vld [vmem:[%s217 + $0x20] sm:$0xf]
        %v318 = vld [vmem:[%s217 + $0x24] sm:$0xf]
        %v319 = vld [vmem:[%s217 + $0x28] sm:$0xf]
        %v320 = vld [vmem:[%s217 + $0x2c] sm:$0xf]
        %v321 = vld [vmem:[%s217 + $0x30] sm:$0xf]
        %v322 = vld [vmem:[%s217 + $0x34] sm:$0xf]
        %v323 = vld [vmem:[%s217 + $0x38] sm:$0xf]
        %v324 = vld [vmem:[%s217 + $0x3c] sm:$0xf]
        %v341 = vunpack.c.l.b16 %v293
        %v342 = vunpack.c.l.b16 %v294
        %v343 = vunpack.c.l.b16 %v295
        %v344 = vunpack.c.l.b16 %v296
        %v345 = vunpack.c.l.b16 %v297
        %v346 = vunpack.c.l.b16 %v298
        %v347 = vunpack.c.l.b16 %v299
        %v348 = vunpack.c.l.b16 %v300
        %v349 = vunpack.c.l.b16 %v301
        %v350 = vunpack.c.l.b16 %v302
        %v351 = vunpack.c.l.b16 %v303
        %v352 = vunpack.c.l.b16 %v304
        %v353 = vunpack.c.l.b16 %v305
        %v354 = vunpack.c.l.b16 %v306
        %v355 = vunpack.c.l.b16 %v307
        %v356 = vunpack.c.l.b16 %v308
        %v357 = vpack.c.b16 %v342, %v341
        %v358 = vpack.c.b16 %v344, %v343
        %v359 = vpack.c.b16 %v346, %v345
        %v360 = vpack.c.b16 %v348, %v347
        %v361 = vpack.c.b16 %v350, %v349
        %v362 = vpack.c.b16 %v352, %v351
        %v363 = vpack.c.b16 %v354, %v353
        %v364 = vpack.c.b16 %v356, %v355
        %v389 = vunpack.c.l.b16 %v309
        %v390 = vunpack.c.l.b16 %v310
        %v391 = vunpack.c.l.b16 %v311
        %v392 = vunpack.c.l.b16 %v312
        %v393 = vunpack.c.l.b16 %v313
        %v394 = vunpack.c.l.b16 %v314
        %v395 = vunpack.c.l.b16 %v315
        %v396 = vunpack.c.l.b16 %v316
        %v397 = vunpack.c.l.b16 %v317
        %v398 = vunpack.c.l.b16 %v318
        %v399 = vunpack.c.l.b16 %v319
        %v400 = vunpack.c.l.b16 %v320
        %v401 = vunpack.c.l.b16 %v321
        %v402 = vunpack.c.l.b16 %v322
        %v403 = vunpack.c.l.b16 %v323
        %v404 = vunpack.c.l.b16 %v324
        %v405 = vpack.c.b16 %v390, %v389
        %v406 = vpack.c.b16 %v392, %v391
        %v407 = vpack.c.b16 %v394, %v393
        %v408 = vpack.c.b16 %v396, %v395
        %v409 = vpack.c.b16 %v398, %v397
        %v410 = vpack.c.b16 %v400, %v399
        %v411 = vpack.c.b16 %v402, %v401
        %v412 = vpack.c.b16 %v404, %v403
        %421 = vmatprep.subr.bf16.mxu0 0
        %422 = vmatpush1.bf16.msra.mxu0 %v412
        %423 = vmatprep.subr.bf16.mxu0 0
        %424 = vmatpush1.bf16.msra.mxu0 %v411
        %425 = vmatprep.subr.bf16.mxu0 0
        %426 = vmatpush1.bf16.msra.mxu0 %v410
        %427 = vmatprep.subr.bf16.mxu0 0
        %428 = vmatpush1.bf16.msra.mxu0 %v409
        %429 = vmatprep.subr.bf16.mxu0 0
        %430 = vmatpush1.bf16.msra.mxu0 %v408
        %431 = vmatprep.subr.bf16.mxu0 0
        %432 = vmatpush1.bf16.msra.mxu0 %v407
        %433 = vmatprep.subr.bf16.mxu0 0
        %434 = vmatpush1.bf16.msra.mxu0 %v406
        %435 = vmatprep.subr.bf16.mxu0 0
        %436 = vmatpush1.bf16.msra.mxu0 %v405
        %437 = vmatprep.subr.bf16.mxu0 0
        %438 = vmatpush2.bf16.msra.mxu0 0
        %439 = vmatprep.subr.bf16.mxu0 0
        %440 = vmatpush2.bf16.msra.mxu0 0
        %441 = vmatprep.subr.bf16.mxu0 0
        %442 = vmatpush2.bf16.msra.mxu0 0
        %443 = vmatprep.subr.bf16.mxu0 0
        %444 = vmatpush2.bf16.msra.mxu0 0
        %445 = vmatprep.subr.bf16.mxu0 0
        %446 = vmatpush2.bf16.msra.mxu0 0
        %447 = vmatprep.subr.bf16.mxu0 0
        %448 = vmatpush2.bf16.msra.mxu0 0
        %449 = vmatprep.subr.bf16.mxu0 0
        %450 = vmatpush2.bf16.msra.mxu0 0
        %451 = vmatprep.subr.bf16.mxu0 0
        %452 = vmatpush2.bf16.msra.mxu0 0
        %453 = vmatprep.mubr.bf16.mxu0 0
        %454 = vmatmul.mubr.bf16.gmra.mxu0 %v357
        %v455 = vpop.f32.mrf.mxu0
        %v456 = vadd.f32 0.0, %v455
        %v457 = vpop.f32.mrf.mxu0
        %v458 = vpop.f32.mrf.mxu0
        %v459 = vadd.f32 0.0, %v458
        %v460 = vpop.f32.mrf.mxu0
        %461 = vmatprep.mubr.bf16.mxu0 0
        %462 = vmatmul.mubr.bf16.gmra.mxu0 %v358
        %v463 = vpop.f32.mrf.mxu0
        %v464 = vadd.f32 0.0, %v463
        %v465 = vpop.f32.mrf.mxu0
        %v466 = vpop.f32.mrf.mxu0
        %v467 = vadd.f32 0.0, %v466
        %v468 = vpop.f32.mrf.mxu0
        %469 = vmatprep.mubr.bf16.mxu0 0
        %470 = vmatmul.mubr.bf16.gmra.mxu0 %v359
        %v471 = vpop.f32.mrf.mxu0
        %v472 = vadd.f32 0.0, %v471
        %v473 = vpop.f32.mrf.mxu0
        %v474 = vpop.f32.mrf.mxu0
        %v475 = vadd.f32 0.0, %v474
        %v476 = vpop.f32.mrf.mxu0
        %477 = vmatprep.mubr.bf16.mxu0 0
        %478 = vmatmul.mubr.bf16.gmra.mxu0 %v360
        %v479 = vpop.f32.mrf.mxu0
        %v480 = vadd.f32 0.0, %v479
        %v481 = vpop.f32.mrf.mxu0
        %v482 = vpop.f32.mrf.mxu0
        %v483 = vadd.f32 0.0, %v482
        %v484 = vpop.f32.mrf.mxu0
        %485 = vmatprep.mubr.bf16.mxu0 0
        %486 = vmatmul.mubr.bf16.gmra.mxu0 %v361
        %v487 = vpop.f32.mrf.mxu0
        %v488 = vadd.f32 0.0, %v487
        %v489 = vpop.f32.mrf.mxu0
        %v490 = vpop.f32.mrf.mxu0
        %v491 = vadd.f32 0.0, %v490
        %v492 = vpop.f32.mrf.mxu0
        %493 = vmatprep.mubr.bf16.mxu0 0
        %494 = vmatmul.mubr.bf16.gmra.mxu0 %v362
        %v495 = vpop.f32.mrf.mxu0
        %v496 = vadd.f32 0.0, %v495
        %v497 = vpop.f32.mrf.mxu0
        %v498 = vpop.f32.mrf.mxu0
        %v499 = vadd.f32 0.0, %v498
        %v500 = vpop.f32.mrf.mxu0
        %501 = vmatprep.mubr.bf16.mxu0 0
        %502 = vmatmul.mubr.bf16.gmra.mxu0 %v363
        %v503 = vpop.f32.mrf.mxu0
        %v504 = vadd.f32 0.0, %v503
        %v505 = vpop.f32.mrf.mxu0
        %v506 = vpop.f32.mrf.mxu0
        %v507 = vadd.f32 0.0, %v506
        %v508 = vpop.f32.mrf.mxu0
        %509 = vmatprep.mubr.bf16.mxu0 0
        %510 = vmatmul.mubr.bf16.gmra.mxu0 %v364
        %v511 = vpop.f32.mrf.mxu0
        %v512 = vadd.f32 0.0, %v511
        %v513 = vpop.f32.mrf.mxu0
        %v514 = vpop.f32.mrf.mxu0
        %v515 = vadd.f32 0.0, %v514
        %v516 = vpop.f32.mrf.mxu0
        %517 = vdwg.mxu0
        %v518 = vadd.f32 %v277, %v456
        %v519 = vadd.f32 %v278, %v459
        %v520 = vadd.f32 %v279, %v464
        %v521 = vadd.f32 %v280, %v467
        %v522 = vadd.f32 %v281, %v472
        %v523 = vadd.f32 %v282, %v475
        %v524 = vadd.f32 %v283, %v480
        %v525 = vadd.f32 %v284, %v483
        %v526 = vadd.f32 %v285, %v488
        %v527 = vadd.f32 %v286, %v491
        %v528 = vadd.f32 %v287, %v496
        %v529 = vadd.f32 %v288, %v499
        %v530 = vadd.f32 %v289, %v504
        %v531 = vadd.f32 %v290, %v507
        %v532 = vadd.f32 %v291, %v512
        %v533 = vadd.f32 %v292, %v515
        %534 = vst [vmem:[%s244] sm:$0xff] %v518
        %535 = vst [vmem:[%s244 + $0x8] sm:$0xff] %v519
        %536 = vst [vmem:[%s244 + $0x10] sm:$0xff] %v520
        %537 = vst [vmem:[%s244 + $0x18] sm:$0xff] %v521
        %538 = vst [vmem:[%s244 + $0x20] sm:$0xff] %v522
        %539 = vst [vmem:[%s244 + $0x28] sm:$0xff] %v523
        %540 = vst [vmem:[%s244 + $0x30] sm:$0xff] %v524
        %541 = vst [vmem:[%s244 + $0x38] sm:$0xff] %v525
        %542 = vst [vmem:[%s244 + $0x40] sm:$0xff] %v526
        %543 = vst [vmem:[%s244 + $0x48] sm:$0xff] %v527
        %544 = vst [vmem:[%s244 + $0x50] sm:$0xff] %v528
        %545 = vst [vmem:[%s244 + $0x58] sm:$0xff] %v529
        %546 = vst [vmem:[%s244 + $0x60] sm:$0xff] %v530
        %547 = vst [vmem:[%s244 + $0x68] sm:$0xff] %v531
        %548 = vst [vmem:[%s244 + $0x70] sm:$0xff] %v532
        %549 = vst [vmem:[%s244 + $0x78] sm:$0xff] %v533
        %s550 = sand.u32 %s118, 1
        %s551 = scalar_lea.sflag [#allocation4], %s550
        %s552 = sand.u32 %s118, 1
        %s553 = smul.addr %s552, 128
        %s554 = scalar_lea.vmem [#allocation7], %s553
        // Predicated region
        $region45: #{tpu_custom_call.1} parent=31 // pred_check
          %p555 = pneg %p128
        $region46: #{tpu_custom_call.1} parent=31 // pred_check_branch
          %557 = sbr.rel (%p555) target = $region48
        $region47: #{tpu_custom_call.1} parent=31 // pred_region
          %s558 = smul.u32 16, %s27
          %s560 = ssub.s32 2048, 2048
          %561 = vsyncadd %s551, %s560
          %s562 = smul.addr %s558, 128
          %s563 = scalar_lea.hbm %s3, %s562
          %s564 = sshll.u32 %s554, 4
          %s565 = int_to_ptr.vmem [resolvable:$true] %s564
          %570 = dma.vmem_to_hbm [thread:$0]  %s565, 2048, %s563, %s551, 128, 128, 8
        $region48: #{tpu_custom_call.1} parent=31 // pred_fallthru
          _
      $region32: #{tpu_custom_call.1} parent=5 // pred_fallthru
        _
      %p571 = scmp.le.s32.totalorder 2, %s18
      // Predicated region
      $region49: #{tpu_custom_call.1} parent=5 // pred_check
        %p572 = pneg %p571
      $region50: #{tpu_custom_call.1} parent=5 // pred_check_branch
        %574 = sbr.rel (%p572) target = $region52
      $region51: #{tpu_custom_call.1} parent=5 // pred_region
        %s575 = ssub.s32 %s18, 2
        // Predicated region
        $region53: #{tpu_custom_call.1} parent=51 // pred_check
          %p576 = pneg %p134
        $region54: #{tpu_custom_call.1} parent=51 // pred_check_branch
          %578 = sbr.rel (%p576) target = $region56
        $region55: #{tpu_custom_call.1} parent=51 // pred_region
          %s579 = sand.u32 %s119, 1
          %s580 = scalar_lea.sflag [#allocation4], %s579
          %s581 = sand.u32 %s119, 1
          %s582 = smul.addr %s581, 128
          %s583 = scalar_lea.vmem [#allocation7], %s582
          %584 = dma.done %s580, 2048
        $region56: #{tpu_custom_call.1} parent=51 // pred_fallthru
          _
      $region52: #{tpu_custom_call.1} parent=5 // pred_fallthru
        _
    $region6: #{tpu_custom_call.1} parent=1 // loop_footer
      %s22 = sadd.s32 1, %s18
    $region7: #{tpu_custom_call.1} parent=1 // loop_footer_branch
      %17 = sbr.rel target = $region3
    $region8: #{tpu_custom_call.1} parent=1 // loop_exit
      _
    %585 = vsyncpa [#allocation3], 1
    %s586 = scalar_lea.sflag [#allocation3], 1
    %587 = vsyncpa %s586, 1
    %588 = vsyncpa [#allocation6], 1
    %s589 = scalar_lea.sflag [#allocation6], 1
    %590 = vsyncpa %s589, 1
    %591 = vsyncpa [#allocation4], 1
    %s592 = scalar_lea.sflag [#allocation4], 1
    %593 = vsyncpa %s592, 1

</llo_original>
